<compile_context>
chip_gen: v6e
topology: v6e:2x2x1
jax: 0.10.0
libtpu: 0.0.40
codegen_flags: <defaults>
</compile_context>

<pallas_src>
import jax
import jax.numpy as jnp
from jax.experimental import pallas as pl
from jax.experimental.pallas import tpu as pltpu


def _round_up(x, m):
    return (x + m - 1) // m * m


def _cdiv(a, b):
    return (a + b - 1) // b


def _hardswish(x):
    # PyTorch nn.Hardswish: x * relu6(x + 3) / 6
    return x * jnp.clip(x + 3.0, 0.0, 6.0) * (1.0 / 6.0)


def _default_epilogue_dtype():
    """bf16 epilogue on chips with a bf16 VPU (v6e/v7x); f32 otherwise."""
    try:
        kind = jax.devices()[0].device_kind.lower()
    except Exception:
        return jnp.float32
    if "v6" in kind or "v7" in kind:
        return jnp.bfloat16
    return jnp.float32


def _make_kernel(p_mid, p_lay, p_2lay, p_act, epilogue_dtype):
    ep = epilogue_dtype
    bf16 = jnp.bfloat16
    f32 = jnp.float32

    def _epi_hardswish(acc_f32, brow_f32):
        # f32 accumulator -> (bias + hardswish) in epilogue dtype -> bf16 operand
        x = acc_f32.astype(ep) + brow_f32.astype(ep)
        return _hardswish(x).astype(bf16)

    def kernel(s_ref, ws1_ref, ws2_ref, wx_ref, wdb_ref, wad2_ref, wa2_ref,
               bias_ref, out_ref):
        biases = bias_ref[...]                       # (8, bmax) f32, single DMA

        # ---- enc_s: Linear -> ReLU -> Linear ----
        h_acc = jnp.dot(s_ref[...], ws1_ref[...], preferred_element_type=f32)
        h = jnp.maximum(h_acc.astype(ep) + biases[0:1, :p_mid].astype(ep), 0.0)
        h_b = h.astype(bf16)

        x1_acc = jnp.dot(h_b, ws2_ref[...], preferred_element_type=f32)
        x1_b = (x1_acc.astype(ep) + biases[1:2, :p_lay].astype(ep)).astype(bf16)

        # ---- DenseNet (concats eliminated; dots sharing an LHS are fused) ----
        # tx = x1 @ [wd1 | wd2a | wa1x]   (column splits are 128-aligned)
        tx = jnp.dot(x1_b, wx_ref[...], preferred_element_type=f32)
        d1_b = _epi_hardswish(tx[:, :p_lay], biases[2:3, :p_lay])

        # td = d1 @ [wd2b | wa1d1]
        td = jnp.dot(d1_b, wdb_ref[...], preferred_element_type=f32)
        d2_b = _epi_hardswish(tx[:, p_lay:p_lay + p_2lay] + td[:, :p_2lay],
                              biases[3:4, :p_2lay])

        # ---- dec_a: Linear -> Hardswish -> Linear -> Tanh ----
        h2_acc = (tx[:, p_lay + p_2lay:] + td[:, p_2lay:]
                  + jnp.dot(d2_b, wad2_ref[...], preferred_element_type=f32))
        h2_b = _epi_hardswish(h2_acc, biases[4:5, :p_mid])

        a = jnp.tanh(jnp.dot(h2_b, wa2_ref[...], preferred_element_type=f32)
                     + biases[5:6, :p_act])          # bias + tanh kept f32 (EUP)
        out_ref[...] = a.astype(out_ref.dtype)

    return kernel


def prepare_params(params, state_dim, action_dim, mid_dim):
    """One-time weight staging (per-matrix padding, row-splits, dot fusion,
    bf16 weights, packed f32 bias slab)."""
    lay = mid_dim // 2
    sp = _round_up(state_dim, 16)        # bf16 sublane multiple for first K dim
    p_mid = _round_up(mid_dim, 128)
    p_lay = _round_up(lay, 128)
    p_2lay = _round_up(2 * lay, 128)
    p_act = _round_up(action_dim, 128)
    bmax = max(p_mid, p_lay, p_2lay, p_act)

    ws1, bs1, ws2, bs2, wd1, bd1, wd2, bd2, wa1, ba1, wa2, ba2 = params
    bf16 = jnp.bfloat16

    def pad(w, rows, cols):
        out = jnp.zeros((rows, cols), jnp.float32)
        return out.at[:w.shape[0], :w.shape[1]].set(w)

    # row-splits eliminating the torch.cat()s
    wd2a, wd2b = wd2[:lay], wd2[lay:]
    wa1x, wa1d1, wa1d2 = wa1[:lay], wa1[lay:2 * lay], wa1[2 * lay:]

    ws1_p = pad(ws1, sp, p_mid).astype(bf16)
    ws2_p = pad(ws2, p_mid, p_lay).astype(bf16)
    # fused RHS for x1: [wd1 | wd2a | wa1x]
    wx_p = jnp.concatenate(
        [pad(wd1, p_lay, p_lay), pad(wd2a, p_lay, p_2lay), pad(wa1x, p_lay, p_mid)],
        axis=1).astype(bf16)
    # fused RHS for d1: [wd2b | wa1d1]
    wdb_p = jnp.concatenate(
        [pad(wd2b, p_lay, p_2lay), pad(wa1d1, p_lay, p_mid)], axis=1).astype(bf16)
    wad2_p = pad(wa1d2, p_2lay, p_mid).astype(bf16)
    wa2_p = pad(wa2, p_mid, p_act).astype(bf16)

    bias = jnp.zeros((8, bmax), jnp.float32)
    bias = bias.at[0, :mid_dim].set(bs1[0])
    bias = bias.at[1, :lay].set(bs2[0])
    bias = bias.at[2, :lay].set(bd1[0])
    bias = bias.at[3, :2 * lay].set(bd2[0])
    bias = bias.at[4, :mid_dim].set(ba1[0])
    bias = bias.at[5, :action_dim].set(ba2[0])

    dims = dict(state_dim=state_dim, action_dim=action_dim, mid_dim=mid_dim,
                sp=sp, p_mid=p_mid, p_lay=p_lay, p_2lay=p_2lay, p_act=p_act,
                bmax=bmax)
    tensors = (ws1_p, ws2_p, wx_p, wdb_p, wad2_p, wa2_p, bias)
    return tensors, dims


def shared_dpg_forward(s, prepared, dims, *, batch_tile=1024,
                       epilogue_dtype=None, out_dtype=jnp.bfloat16):
    """Pallas wrapper. `prepared`, `dims` come from prepare_params()."""
    if epilogue_dtype is None:
        epilogue_dtype = _default_epilogue_dtype()

    B, state_dim = s.shape
    assert state_dim == dims["state_dim"]
    sp = dims["sp"]
    p_mid, p_lay = dims["p_mid"], dims["p_lay"]
    p_2lay, p_act = dims["p_2lay"], dims["p_act"]

    # Batch tile: multiple of 16 (bf16-tiled s/out blocks), and split so the
    # grid has >= 2 steps when the batch allows it (v7x megacore sharding).
    SUB = 16
    b_ceil = _round_up(B, SUB)
    tb = min(batch_tile, b_ceil)
    tb = max(SUB, (tb // SUB) * SUB)
    if tb >= b_ceil and b_ceil >= 2 * SUB:
        tb = _round_up(_cdiv(b_ceil, 2), SUB)
    b_pad = _round_up(B, tb)
    grid = (b_pad // tb,)

    # bf16 input, padded only to the bf16 sublane multiple along features.
    s_p = jnp.zeros((b_pad, sp), jnp.bfloat16).at[:B, :state_dim].set(
        s.astype(jnp.bfloat16))

    ws1_p, ws2_p, wx_p, wdb_p, wad2_p, wa2_p, bias = prepared
    tensors = (ws1_p, ws2_p, wx_p, wdb_p, wad2_p, wa2_p, bias)

    kernel = _make_kernel(p_mid, p_lay, p_2lay, p_act, epilogue_dtype)

    s_spec = pl.BlockSpec((tb, sp), lambda i: (i, 0))
    const_specs = [pl.BlockSpec(t.shape, lambda i: (0, 0)) for t in tensors]
    out_spec = pl.BlockSpec((tb, p_act), lambda i: (i, 0))

    # Advisory cost estimate (padded shapes).
    flops_per_row = 2 * (sp * p_mid + p_mid * p_lay
                         + p_lay * (p_lay + p_2lay + p_mid)
                         + p_lay * (p_2lay + p_mid)
                         + p_2lay * p_mid + p_mid * p_act)
    param_bytes = sum(int(t.size) * t.dtype.itemsize for t in tensors)
    out_itemsize = jnp.dtype(out_dtype).itemsize
    cost = pl.CostEstimate(
        flops=int(b_pad * flops_per_row),
        transcendentals=int(b_pad * p_act),
        bytes_accessed=int(s_p.size * 2 + b_pad * p_act * out_itemsize
                           + param_bytes),
    )

    # Explicit VMEM budget: weights/biases (x2 buffers), I/O blocks (x2),
    # f32 intermediates (x2 headroom) + slack.
    io_block_bytes = tb * sp * 2 + tb * p_act * out_itemsize
    interm_bytes = tb * 4 * (p_mid + p_lay + (p_lay + p_2lay + p_mid)
                             + (p_2lay + p_mid) + p_2lay + p_mid + p_act)
    vmem_est = 2 * param_bytes + 2 * io_block_bytes + 2 * interm_bytes + (4 << 20)
    vmem_limit = int(min(max(vmem_est, 16 << 20), 100 << 20))

    out = pl.pallas_call(
        kernel,
        out_shape=jax.ShapeDtypeStruct((b_pad, p_act), out_dtype),
        grid=grid,
        in_specs=[s_spec] + const_specs,
        out_specs=out_spec,
        compiler_params=pltpu.CompilerParams(
            dimension_semantics=("parallel",),
            vmem_limit_bytes=vmem_limit,
        ),
        cost_estimate=cost,
    )(s_p, *tensors)

    return out[:B, :dims["action_dim"]].astype(jnp.float32)


def init_params(key, state_dim, action_dim, mid_dim):
    """Deterministic init mirroring PyTorch default Linear init.
    Weights stored as (in_dim, out_dim)."""
    lay_dim = mid_dim // 2          # DenseNet inp_dim
    out_dim = lay_dim * 4           # DenseNet out_dim

    shapes = [
        (state_dim, mid_dim),       # enc_s.0
        (mid_dim, lay_dim),         # enc_s.2
        (lay_dim, lay_dim),         # net.dense1.0
        (2 * lay_dim, 2 * lay_dim), # net.dense2.0
        (out_dim, mid_dim),         # dec_a.0
        (mid_dim, action_dim),      # dec_a.2
    ]
    params = []
    for shp in shapes:
        key, kw, kb = jax.random.split(key, 3)
        bound = 1.0 / jnp.sqrt(shp[0])
        w = jax.random.uniform(kw, shp, jnp.float32, -bound, bound)
        b = jax.random.uniform(kb, (1, shp[1]), jnp.float32, -bound, bound)
        params.extend([w, b])
    return tuple(params)


def reference_forward(s, params):
    """Plain-JAX f32 reference of SharedDPG.forward(s, noise_std=0.0)."""
    ws1, bs1, ws2, bs2, wd1, bd1, wd2, bd2, wa1, ba1, wa2, ba2 = params
    h = jnp.maximum(s @ ws1 + bs1, 0.0)
    x1 = h @ ws2 + bs2
    d1 = _hardswish(x1 @ wd1 + bd1)
    x2 = jnp.concatenate([x1, d1], axis=1)
    d2 = _hardswish(x2 @ wd2 + bd2)
    x3 = jnp.concatenate([x2, d2], axis=1)
    h2 = _hardswish(x3 @ wa1 + ba1)
    return jnp.tanh(h2 @ wa2 + ba2)


if __name__ == "__main__":
    # Small, forward-consistent shapes; batch is a non-multiple of the tile to
    # exercise the multi-step grid + batch-padding path.
    B, state_dim, action_dim, mid_dim = 40, 8, 4, 32

    key = jax.random.PRNGKey(0)
    key, ks = jax.random.split(key)
    s = jax.random.normal(ks, (B, state_dim), jnp.float32)
    params = init_params(key, state_dim, action_dim, mid_dim)

    prepared, dims = prepare_params(params, state_dim, action_dim, mid_dim)

    a = shared_dpg_forward(s, prepared, dims, batch_tile=16)
    a = jax.block_until_ready(a)

    a_ref = reference_forward(s, params)
    assert a.shape == (B, action_dim)
    max_err = float(jnp.max(jnp.abs(a - a_ref)))
    # bf16 matmul operands / epilogue / output with f32 accumulation vs f32 ref.
    assert jnp.allclose(a, a_ref, atol=5e-2, rtol=5e-2), f"mismatch, max|err|={max_err}"

    # TODO(synk): add_noise / critic / next_q_action paths (RNG + spectral-norm
    # dec_q) are not part of forward(noise_std=0.0) and are not kernelized.
    print("KERNEL_OK")
</pallas_src>

<mosaic_0001>
module attributes {stable_mosaic.version = 11 : i64} {
  func.func @kernel(%arg0: i32, %arg1: memref<16x16xbf16, #tpu.memory_space<vmem>>, %arg2: memref<16x128xbf16, #tpu.memory_space<vmem>>, %arg3: memref<128x128xbf16, #tpu.memory_space<vmem>>, %arg4: memref<128x384xbf16, #tpu.memory_space<vmem>>, %arg5: memref<128x256xbf16, #tpu.memory_space<vmem>>, %arg6: memref<128x128xbf16, #tpu.memory_space<vmem>>, %arg7: memref<128x128xbf16, #tpu.memory_space<vmem>>, %arg8: memref<8x128xf32, #tpu.memory_space<vmem>>, %arg9: memref<16x128xbf16, #tpu.memory_space<vmem>>) attributes {dimension_semantics = [#tpu.dimension_semantics<parallel>], iteration_bounds = array<i64: 3>, scalar_prefetch = 0 : i64, scratch_operands = 0 : i64, tpu.core_type = #tpu.core_type<tc>, window_params = [{transform_indices = @transform_0, window_bounds = array<i64: 16, 16>}, {pipeline_mode = #tpu.pipeline_mode<synchronous>, transform_indices = @transform_1, window_bounds = array<i64: 16, 128>}, {pipeline_mode = #tpu.pipeline_mode<synchronous>, transform_indices = @transform_2, window_bounds = array<i64: 128, 128>}, {pipeline_mode = #tpu.pipeline_mode<synchronous>, transform_indices = @transform_3, window_bounds = array<i64: 128, 384>}, {pipeline_mode = #tpu.pipeline_mode<synchronous>, transform_indices = @transform_4, window_bounds = array<i64: 128, 256>}, {pipeline_mode = #tpu.pipeline_mode<synchronous>, transform_indices = @transform_5, window_bounds = array<i64: 128, 128>}, {pipeline_mode = #tpu.pipeline_mode<synchronous>, transform_indices = @transform_6, window_bounds = array<i64: 128, 128>}, {pipeline_mode = #tpu.pipeline_mode<synchronous>, transform_indices = @transform_7, window_bounds = array<i64: 8, 128>}, {transform_indices = @transform_8, window_bounds = array<i64: 16, 128>}]} {
    %c0 = arith.constant 0 : index
    %c0_0 = arith.constant 0 : index
    %0 = vector.load %arg8[%c0, %c0_0] : memref<8x128xf32, #tpu.memory_space<vmem>>, vector<8x128xf32>
    %c0_1 = arith.constant 0 : index
    %c0_2 = arith.constant 0 : index
    %1 = vector.load %arg1[%c0_1, %c0_2] : memref<16x16xbf16, #tpu.memory_space<vmem>>, vector<16x16xbf16>
    %c0_3 = arith.constant 0 : index
    %c0_4 = arith.constant 0 : index
    %2 = vector.load %arg2[%c0_3, %c0_4] : memref<16x128xbf16, #tpu.memory_space<vmem>>, vector<16x128xbf16>
    %cst = arith.constant dense<0.000000e+00> : vector<16x128xf32>
    %3 = tpu.matmul %1, %2, %cst {dimension_numbers = #tpu.dot_dimension_numbers<[1], [0], [0], [1], [0, 0, 1, 1], [], []>} : vector<16x16xbf16>, vector<16x128xbf16>, vector<16x128xf32> -> vector<16x128xf32>
    %4 = vector.extract_strided_slice %0 {offsets = [0, 0], sizes = [1, 128], strides = [1, 1]} : vector<8x128xf32> to vector<1x128xf32>
    %5 = vector.broadcast %4 : vector<1x128xf32> to vector<16x128xf32>
    %6 = arith.addf %3, %5 : vector<16x128xf32>
    %cst_5 = arith.constant 0.000000e+00 : f32
    %7 = vector.broadcast %cst_5 : f32 to vector<16x128xf32>
    %8 = arith.maximumf %6, %7 : vector<16x128xf32>
    %9 = arith.truncf %8 : vector<16x128xf32> to vector<16x128xbf16>
    %c0_6 = arith.constant 0 : index
    %c0_7 = arith.constant 0 : index
    %10 = vector.load %arg3[%c0_6, %c0_7] : memref<128x128xbf16, #tpu.memory_space<vmem>>, vector<128x128xbf16>
    %cst_8 = arith.constant dense<0.000000e+00> : vector<16x128xf32>
    %11 = tpu.matmul %9, %10, %cst_8 {dimension_numbers = #tpu.dot_dimension_numbers<[1], [0], [0], [1], [0, 0, 1, 1], [], []>} : vector<16x128xbf16>, vector<128x128xbf16>, vector<16x128xf32> -> vector<16x128xf32>
    %12 = vector.extract_strided_slice %0 {offsets = [1, 0], sizes = [1, 128], strides = [1, 1]} : vector<8x128xf32> to vector<1x128xf32>
    %13 = vector.broadcast %12 : vector<1x128xf32> to vector<16x128xf32>
    %14 = arith.addf %11, %13 : vector<16x128xf32>
    %15 = arith.truncf %14 : vector<16x128xf32> to vector<16x128xbf16>
    %c0_9 = arith.constant 0 : index
    %c0_10 = arith.constant 0 : index
    %16 = vector.load %arg4[%c0_9, %c0_10] : memref<128x384xbf16, #tpu.memory_space<vmem>>, vector<128x384xbf16>
    %cst_11 = arith.constant dense<0.000000e+00> : vector<16x384xf32>
    %17 = tpu.matmul %15, %16, %cst_11 {dimension_numbers = #tpu.dot_dimension_numbers<[1], [0], [0], [1], [0, 0, 1, 1], [], []>} : vector<16x128xbf16>, vector<128x384xbf16>, vector<16x384xf32> -> vector<16x384xf32>
    %18 = vector.extract_strided_slice %17 {offsets = [0, 0], sizes = [16, 128], strides = [1, 1]} : vector<16x384xf32> to vector<16x128xf32>
    %19 = vector.extract_strided_slice %0 {offsets = [2, 0], sizes = [1, 128], strides = [1, 1]} : vector<8x128xf32> to vector<1x128xf32>
    %20 = vector.broadcast %19 : vector<1x128xf32> to vector<16x128xf32>
    %21 = arith.addf %18, %20 : vector<16x128xf32>
    %cst_12 = arith.constant 3.000000e+00 : f32
    %22 = vector.broadcast %cst_12 : f32 to vector<16x128xf32>
    %23 = arith.addf %21, %22 : vector<16x128xf32>
    %cst_13 = arith.constant 0.000000e+00 : f32
    %cst_14 = arith.constant 6.000000e+00 : f32
    %24 = vector.broadcast %cst_13 : f32 to vector<16x128xf32>
    %25 = arith.maximumf %24, %23 : vector<16x128xf32>
    %26 = vector.broadcast %cst_14 : f32 to vector<16x128xf32>
    %27 = arith.minimumf %26, %25 : vector<16x128xf32>
    %28 = arith.mulf %21, %27 : vector<16x128xf32>
    %cst_15 = arith.constant 0.166666672 : f32
    %29 = vector.broadcast %cst_15 : f32 to vector<16x128xf32>
    %30 = arith.mulf %28, %29 : vector<16x128xf32>
    %31 = arith.truncf %30 : vector<16x128xf32> to vector<16x128xbf16>
    %c0_16 = arith.constant 0 : index
    %c0_17 = arith.constant 0 : index
    %32 = vector.load %arg5[%c0_16, %c0_17] : memref<128x256xbf16, #tpu.memory_space<vmem>>, vector<128x256xbf16>
    %cst_18 = arith.constant dense<0.000000e+00> : vector<16x256xf32>
    %33 = tpu.matmul %31, %32, %cst_18 {dimension_numbers = #tpu.dot_dimension_numbers<[1], [0], [0], [1], [0, 0, 1, 1], [], []>} : vector<16x128xbf16>, vector<128x256xbf16>, vector<16x256xf32> -> vector<16x256xf32>
    %34 = vector.extract_strided_slice %17 {offsets = [0, 128], sizes = [16, 128], strides = [1, 1]} : vector<16x384xf32> to vector<16x128xf32>
    %35 = vector.extract_strided_slice %33 {offsets = [0, 0], sizes = [16, 128], strides = [1, 1]} : vector<16x256xf32> to vector<16x128xf32>
    %36 = arith.addf %34, %35 : vector<16x128xf32>
    %37 = vector.extract_strided_slice %0 {offsets = [3, 0], sizes = [1, 128], strides = [1, 1]} : vector<8x128xf32> to vector<1x128xf32>
    %38 = vector.broadcast %37 : vector<1x128xf32> to vector<16x128xf32>
    %39 = arith.addf %36, %38 : vector<16x128xf32>
    %cst_19 = arith.constant 3.000000e+00 : f32
    %40 = vector.broadcast %cst_19 : f32 to vector<16x128xf32>
    %41 = arith.addf %39, %40 : vector<16x128xf32>
    %cst_20 = arith.constant 0.000000e+00 : f32
    %cst_21 = arith.constant 6.000000e+00 : f32
    %42 = vector.broadcast %cst_20 : f32 to vector<16x128xf32>
    %43 = arith.maximumf %42, %41 : vector<16x128xf32>
    %44 = vector.broadcast %cst_21 : f32 to vector<16x128xf32>
    %45 = arith.minimumf %44, %43 : vector<16x128xf32>
    %46 = arith.mulf %39, %45 : vector<16x128xf32>
    %cst_22 = arith.constant 0.166666672 : f32
    %47 = vector.broadcast %cst_22 : f32 to vector<16x128xf32>
    %48 = arith.mulf %46, %47 : vector<16x128xf32>
    %49 = arith.truncf %48 : vector<16x128xf32> to vector<16x128xbf16>
    %50 = vector.extract_strided_slice %17 {offsets = [0, 256], sizes = [16, 128], strides = [1, 1]} : vector<16x384xf32> to vector<16x128xf32>
    %51 = vector.extract_strided_slice %33 {offsets = [0, 128], sizes = [16, 128], strides = [1, 1]} : vector<16x256xf32> to vector<16x128xf32>
    %52 = arith.addf %50, %51 : vector<16x128xf32>
    %c0_23 = arith.constant 0 : index
    %c0_24 = arith.constant 0 : index
    %53 = vector.load %arg6[%c0_23, %c0_24] : memref<128x128xbf16, #tpu.memory_space<vmem>>, vector<128x128xbf16>
    %cst_25 = arith.constant dense<0.000000e+00> : vector<16x128xf32>
    %54 = tpu.matmul %49, %53, %cst_25 {dimension_numbers = #tpu.dot_dimension_numbers<[1], [0], [0], [1], [0, 0, 1, 1], [], []>} : vector<16x128xbf16>, vector<128x128xbf16>, vector<16x128xf32> -> vector<16x128xf32>
    %55 = arith.addf %52, %54 : vector<16x128xf32>
    %56 = vector.extract_strided_slice %0 {offsets = [4, 0], sizes = [1, 128], strides = [1, 1]} : vector<8x128xf32> to vector<1x128xf32>
    %57 = vector.broadcast %56 : vector<1x128xf32> to vector<16x128xf32>
    %58 = arith.addf %55, %57 : vector<16x128xf32>
    %cst_26 = arith.constant 3.000000e+00 : f32
    %59 = vector.broadcast %cst_26 : f32 to vector<16x128xf32>
    %60 = arith.addf %58, %59 : vector<16x128xf32>
    %cst_27 = arith.constant 0.000000e+00 : f32
    %cst_28 = arith.constant 6.000000e+00 : f32
    %61 = vector.broadcast %cst_27 : f32 to vector<16x128xf32>
    %62 = arith.maximumf %61, %60 : vector<16x128xf32>
    %63 = vector.broadcast %cst_28 : f32 to vector<16x128xf32>
    %64 = arith.minimumf %63, %62 : vector<16x128xf32>
    %65 = arith.mulf %58, %64 : vector<16x128xf32>
    %cst_29 = arith.constant 0.166666672 : f32
    %66 = vector.broadcast %cst_29 : f32 to vector<16x128xf32>
    %67 = arith.mulf %65, %66 : vector<16x128xf32>
    %68 = arith.truncf %67 : vector<16x128xf32> to vector<16x128xbf16>
    %c0_30 = arith.constant 0 : index
    %c0_31 = arith.constant 0 : index
    %69 = vector.load %arg7[%c0_30, %c0_31] : memref<128x128xbf16, #tpu.memory_space<vmem>>, vector<128x128xbf16>
    %cst_32 = arith.constant dense<0.000000e+00> : vector<16x128xf32>
    %70 = tpu.matmul %68, %69, %cst_32 {dimension_numbers = #tpu.dot_dimension_numbers<[1], [0], [0], [1], [0, 0, 1, 1], [], []>} : vector<16x128xbf16>, vector<128x128xbf16>, vector<16x128xf32> -> vector<16x128xf32>
    %71 = vector.extract_strided_slice %0 {offsets = [5, 0], sizes = [1, 128], strides = [1, 1]} : vector<8x128xf32> to vector<1x128xf32>
    %72 = vector.broadcast %71 : vector<1x128xf32> to vector<16x128xf32>
    %73 = arith.addf %70, %72 : vector<16x128xf32>
    %74 = math.tanh %73 : vector<16x128xf32>
    %75 = arith.truncf %74 : vector<16x128xf32> to vector<16x128xbf16>
    %c0_33 = arith.constant 0 : index
    %c0_34 = arith.constant 0 : index
    %76 = vector.load %arg9[%c0_33, %c0_34] : memref<16x128xbf16, #tpu.memory_space<vmem>>, vector<16x128xbf16>
    tpu.vector_store %arg9[%c0_33, %c0_34], %75 {strides = array<i32>} : memref<16x128xbf16, #tpu.memory_space<vmem>>, vector<16x128xbf16>,
    return
  }
  func.func @transform_0(%arg0: i32) -> (i32, i32) {
    %c0_i32 = arith.constant 0 : i32
    %c0_i32_0 = arith.constant 0 : i32
    return %arg0, %c0_i32 : i32, i32
  }
  func.func @transform_1(%arg0: i32) -> (i32, i32) {
    %c0_i32 = arith.constant 0 : i32
    %c0_i32_0 = arith.constant 0 : i32
    %c0_i32_1 = arith.constant 0 : i32
    return %c0_i32, %c0_i32_0 : i32, i32
  }
  func.func @transform_2(%arg0: i32) -> (i32, i32) {
    %c0_i32 = arith.constant 0 : i32
    %c0_i32_0 = arith.constant 0 : i32
    %c0_i32_1 = arith.constant 0 : i32
    return %c0_i32, %c0_i32_0 : i32, i32
  }
  func.func @transform_3(%arg0: i32) -> (i32, i32) {
    %c0_i32 = arith.constant 0 : i32
    %c0_i32_0 = arith.constant 0 : i32
    %c0_i32_1 = arith.constant 0 : i32
    return %c0_i32, %c0_i32_0 : i32, i32
  }
  func.func @transform_4(%arg0: i32) -> (i32, i32) {
    %c0_i32 = arith.constant 0 : i32
    %c0_i32_0 = arith.constant 0 : i32
    %c0_i32_1 = arith.constant 0 : i32
    return %c0_i32, %c0_i32_0 : i32, i32
  }
  func.func @transform_5(%arg0: i32) -> (i32, i32) {
    %c0_i32 = arith.constant 0 : i32
    %c0_i32_0 = arith.constant 0 : i32
    %c0_i32_1 = arith.constant 0 : i32
    return %c0_i32, %c0_i32_0 : i32, i32
  }
  func.func @transform_6(%arg0: i32) -> (i32, i32) {
    %c0_i32 = arith.constant 0 : i32
    %c0_i32_0 = arith.constant 0 : i32
    %c0_i32_1 = arith.constant 0 : i32
    return %c0_i32, %c0_i32_0 : i32, i32
  }
  func.func @transform_7(%arg0: i32) -> (i32, i32) {
    %c0_i32 = arith.constant 0 : i32
    %c0_i32_0 = arith.constant 0 : i32
    %c0_i32_1 = arith.constant 0 : i32
    return %c0_i32, %c0_i32_0 : i32, i32
  }
  func.func @transform_8(%arg0: i32) -> (i32, i32) {
    %c0_i32 = arith.constant 0 : i32
    %c0_i32_0 = arith.constant 0 : i32
    return %arg0, %c0_i32 : i32, i32
  }
}

</mosaic_0001>

<llo_original>
// kernel: tpu_custom_call.1
$region0: #{tpu_custom_call.1}
  #allocation0 [shape = 'u32[]', space=smem, size = 0x4, offset = 0x4, fixed_abs, tag = 'smem constant byte address 0x4 - core index']
  #allocation1 [shape = 'u32[144,128]{1,0:T(1,128)}', space=vmem, size = 0x12000, scoped, tag = 'internal scratch']
  %s0 = inlined_call_operand.vmem [shape: bf16[48,16], index: 0, kind: input, shape index: {}]
  %s1 = inlined_call_operand.vmem [shape: bf16[16,128], index: 1, kind: input, shape index: {}]
  %s2 = inlined_call_operand.hbm [shape: bf16[128,128], index: 2, kind: input, shape index: {}]
  %s3 = inlined_call_operand.hbm [shape: bf16[128,384], index: 3, kind: input, shape index: {}]
  %s4 = inlined_call_operand.hbm [shape: bf16[128,256], index: 4, kind: input, shape index: {}]
  %s5 = inlined_call_operand.hbm [shape: bf16[128,128], index: 5, kind: input, shape index: {}]
  %s6 = inlined_call_operand.hbm [shape: bf16[128,128], index: 6, kind: input, shape index: {}]
  %s7 = inlined_call_operand.vmem [shape: f32[8,128], index: 7, kind: input, shape index: {}]
  %s8 = inlined_call_operand.hbm [shape: bf16[48,128], index: 8, kind: output, shape index: {}]
  %s9 = sld [smem:[#allocation0]]
  $region85: #{tpu_custom_call.1} parent=0
    _
  %s11 = ssub.s32 1, %s9
  %s12 = scalar_select 0, %s11, %s9
  $region1: #{tpu_custom_call.1} parent=0
    #allocation2 [shape = 'u8[32768]{0}', space=vmem, size = 0x8000, scoped, tag = 'input window, operand 2, single buffered']
    #allocation3 [shape = 's32[2]{0}', space=sflag, size = 0x8, scoped, tag = 'scoped memory for tpu_custom_call.1']
    #allocation4 [shape = 's32[2]{0}', space=sflag, size = 0x8, scoped, tag = 'scoped memory for tpu_custom_call.1']
    #allocation5 [shape = 'u8[98304]{0}', space=vmem, size = 0x18000, scoped, tag = 'input window, operand 3, single buffered']
    #allocation6 [shape = 's32[1]{0}', space=sflag, size = 0x4, scoped, tag = 'scoped memory for tpu_custom_call.1']
    #allocation7 [shape = 'u8[65536]{0}', space=vmem, size = 0x10000, scoped, tag = 'input window, operand 4, single buffered']
    #allocation8 [shape = 'u8[32768]{0}', space=vmem, size = 0x8000, scoped, tag = 'input window, operand 5, single buffered']
    #allocation9 [shape = 's32[1]{0}', space=sflag, size = 0x4, scoped, tag = 'scoped memory for tpu_custom_call.1']
    #allocation10 [shape = 'u8[32768]{0}', space=vmem, size = 0x8000, scoped, tag = 'input window, operand 6, single buffered']
    #allocation11 [shape = 'u8[8192]{0}', space=vmem, size = 0x2000, scoped, tag = 'output window, operand 0']
    %13 = vsyncpa [#allocation3], 0
    %14 = vsyncpa [#allocation6], 0
    %15 = vsyncpa [#allocation9], 0
    %16 = vsyncpa [#allocation4], 0
    %s17 = scalar_lea.sflag [#allocation4], 1
    %18 = vsyncpa %s17, 0
    loop: start=0, step=1, limit=5
    $region2: #{tpu_custom_call.1} parent=1 // loop_pre_header
      _
    $region3: #{tpu_custom_call.1} parent=1 // loop_header
      %s20 = sphi 0, %s24
      %p21 = scmp.ge.s32.totalorder %s20, 5
      %s30 = sphi 0, %s32
      %s33 = sphi 0, %s30
      %s34 = sphi 0, %s33
      %s50 = sphi 0, %s34
      %s54 = sphi 0, %s54
      %s56 = sphi 0, %s54
      %s57 = sphi 0, %s56
      %s71 = sphi 0, %s57
      %s75 = sphi 0, %s75
      %s77 = sphi 0, %s75
      %s78 = sphi 0, %s77
      %s92 = sphi 0, %s78
      %s96 = sphi 0, %s96
      %s98 = sphi 0, %s96
      %s99 = sphi 0, %s98
      %s113 = sphi 0, %s99
      %s117 = sphi 0, %s117
      %s119 = sphi 0, %s117
      %s120 = sphi 0, %s119
      %s134 = sphi 0, %s120
      %s138 = sphi 0, %s138
      %s140 = sphi 0, %s138
      %s141 = sphi 0, %s140
      %s155 = sphi 0, %s141
      %s159 = sphi 0, %s159
      %s161 = sphi 0, %s159
      %s162 = sphi 0, %s161
      %s176 = sphi 0, %s162
      %s180 = sphi 0, %s180
      %s182 = sphi 0, %s180
      %s183 = sphi 0, %s182
      %s197 = sphi 0, %s183
      %s203 = sphi 0, %s205
      %s206 = sphi 0, %s203
      %s207 = sphi 0, %s206
      %s223 = sphi 0, %s207
    $region4: #{tpu_custom_call.1} parent=1 // loop_header_branch
      %23 = sbr.rel (%p21) target = $region8
    $region5: #{tpu_custom_call.1} parent=1 // loop_body
      %s25 = ssub.s32 %s20, 1
      %s26 = ssub.s32 %s20, 2
      %s27 = sadd.s32 %s20, 1
      %s28 = ssub.s32 %s20, %s27
      %p29 = scmp.eq.s32.totalorder %s28, 0
      %s31 = sadd.s32 %s30, 1
      %s32 = scalar_select %p29, %s30, %s31
      %p35 = pneg %p29
      %p36 = scmp.eq.s32.totalorder %s20, 2
      %p37 = por %p35, %p36
      %p38 = scmp.ne.s32.totalorder %s30, %s33
      %p39 = scmp.eq.s32.totalorder %s20, 0
      %p40 = por %p38, %p39
      %p41 = scmp.ne.s32.totalorder %s30, %s33
      %p42 = scmp.eq.s32.totalorder %s25, 2
      %p43 = por %p41, %p42
      %p44 = scmp.ne.s32.totalorder %s33, %s34
      %p45 = scmp.eq.s32.totalorder %s25, 0
      %p46 = por %p44, %p45
      %p47 = scmp.ne.s32.totalorder %s33, %s34
      %p48 = scmp.eq.s32.totalorder %s26, 2
      %p49 = por %p47, %p48
      %p51 = scmp.ne.s32.totalorder %s34, %s50
      %p52 = scmp.eq.s32.totalorder %s26, 0
      %p53 = por %p51, %p52
      %s55 = sadd.s32 %s54, 1
      %p58 = scmp.eq.s32.totalorder %s20, 2
      %p59 = scmp.ne.s32.totalorder %s54, %s56
      %p60 = scmp.eq.s32.totalorder %s20, 0
      %p61 = por %p59, %p60
      %p62 = scmp.ne.s32.totalorder %s54, %s56
      %p63 = scmp.eq.s32.totalorder %s25, 2
      %p64 = por %p62, %p63
      %p65 = scmp.ne.s32.totalorder %s56, %s57
      %p66 = scmp.eq.s32.totalorder %s25, 0
      %p67 = por %p65, %p66
      %p68 = scmp.ne.s32.totalorder %s56, %s57
      %p69 = scmp.eq.s32.totalorder %s26, 2
      %p70 = por %p68, %p69
      %p72 = scmp.ne.s32.totalorder %s57, %s71
      %p73 = scmp.eq.s32.totalorder %s26, 0
      %p74 = por %p72, %p73
      %s76 = sadd.s32 %s75, 1
      %p79 = scmp.eq.s32.totalorder %s20, 2
      %p80 = scmp.ne.s32.totalorder %s75, %s77
      %p81 = scmp.eq.s32.totalorder %s20, 0
      %p82 = por %p80, %p81
      %p83 = scmp.ne.s32.totalorder %s75, %s77
      %p84 = scmp.eq.s32.totalorder %s25, 2
      %p85 = por %p83, %p84
      %p86 = scmp.ne.s32.totalorder %s77, %s78
      %p87 = scmp.eq.s32.totalorder %s25, 0
      %p88 = por %p86, %p87
      %p89 = scmp.ne.s32.totalorder %s77, %s78
      %p90 = scmp.eq.s32.totalorder %s26, 2
      %p91 = por %p89, %p90
      %p93 = scmp.ne.s32.totalorder %s78, %s92
      %p94 = scmp.eq.s32.totalorder %s26, 0
      %p95 = por %p93, %p94
      %s97 = sadd.s32 %s96, 1
      %p100 = scmp.eq.s32.totalorder %s20, 2
      %p101 = scmp.ne.s32.totalorder %s96, %s98
      %p102 = scmp.eq.s32.totalorder %s20, 0
      %p103 = por %p101, %p102
      %p104 = scmp.ne.s32.totalorder %s96, %s98
      %p105 = scmp.eq.s32.totalorder %s25, 2
      %p106 = por %p104, %p105
      %p107 = scmp.ne.s32.totalorder %s98, %s99
      %p108 = scmp.eq.s32.totalorder %s25, 0
      %p109 = por %p107, %p108
      %p110 = scmp.ne.s32.totalorder %s98, %s99
      %p111 = scmp.eq.s32.totalorder %s26, 2
      %p112 = por %p110, %p111
      %p114 = scmp.ne.s32.totalorder %s99, %s113
      %p115 = scmp.eq.s32.totalorder %s26, 0
      %p116 = por %p114, %p115
      %s118 = sadd.s32 %s117, 1
      %p121 = scmp.eq.s32.totalorder %s20, 2
      %p122 = scmp.ne.s32.totalorder %s117, %s119
      %p123 = scmp.eq.s32.totalorder %s20, 0
      %p124 = por %p122, %p123
      %p125 = scmp.ne.s32.totalorder %s117, %s119
      %p126 = scmp.eq.s32.totalorder %s25, 2
      %p127 = por %p125, %p126
      %p128 = scmp.ne.s32.totalorder %s119, %s120
      %p129 = scmp.eq.s32.totalorder %s25, 0
      %p130 = por %p128, %p129
      %p131 = scmp.ne.s32.totalorder %s119, %s120
      %p132 = scmp.eq.s32.totalorder %s26, 2
      %p133 = por %p131, %p132
      %p135 = scmp.ne.s32.totalorder %s120, %s134
      %p136 = scmp.eq.s32.totalorder %s26, 0
      %p137 = por %p135, %p136
      %s139 = sadd.s32 %s138, 1
      %p142 = scmp.eq.s32.totalorder %s20, 2
      %p143 = scmp.ne.s32.totalorder %s138, %s140
      %p144 = scmp.eq.s32.totalorder %s20, 0
      %p145 = por %p143, %p144
      %p146 = scmp.ne.s32.totalorder %s138, %s140
      %p147 = scmp.eq.s32.totalorder %s25, 2
      %p148 = por %p146, %p147
      %p149 = scmp.ne.s32.totalorder %s140, %s141
      %p150 = scmp.eq.s32.totalorder %s25, 0
      %p151 = por %p149, %p150
      %p152 = scmp.ne.s32.totalorder %s140, %s141
      %p153 = scmp.eq.s32.totalorder %s26, 2
      %p154 = por %p152, %p153
      %p156 = scmp.ne.s32.totalorder %s141, %s155
      %p157 = scmp.eq.s32.totalorder %s26, 0
      %p158 = por %p156, %p157
      %s160 = sadd.s32 %s159, 1
      %p163 = scmp.eq.s32.totalorder %s20, 2
      %p164 = scmp.ne.s32.totalorder %s159, %s161
      %p165 = scmp.eq.s32.totalorder %s20, 0
      %p166 = por %p164, %p165
      %p167 = scmp.ne.s32.totalorder %s159, %s161
      %p168 = scmp.eq.s32.totalorder %s25, 2
      %p169 = por %p167, %p168
      %p170 = scmp.ne.s32.totalorder %s161, %s162
      %p171 = scmp.eq.s32.totalorder %s25, 0
      %p172 = por %p170, %p171
      %p173 = scmp.ne.s32.totalorder %s161, %s162
      %p174 = scmp.eq.s32.totalorder %s26, 2
      %p175 = por %p173, %p174
      %p177 = scmp.ne.s32.totalorder %s162, %s176
      %p178 = scmp.eq.s32.totalorder %s26, 0
      %p179 = por %p177, %p178
      %s181 = sadd.s32 %s180, 1
      %p184 = scmp.eq.s32.totalorder %s20, 2
      %p185 = scmp.ne.s32.totalorder %s180, %s182
      %p186 = scmp.eq.s32.totalorder %s20, 0
      %p187 = por %p185, %p186
      %p188 = scmp.ne.s32.totalorder %s180, %s182
      %p189 = scmp.eq.s32.totalorder %s25, 2
      %p190 = por %p188, %p189
      %p191 = scmp.ne.s32.totalorder %s182, %s183
      %p192 = scmp.eq.s32.totalorder %s25, 0
      %p193 = por %p191, %p192
      %p194 = scmp.ne.s32.totalorder %s182, %s183
      %p195 = scmp.eq.s32.totalorder %s26, 2
      %p196 = por %p194, %p195
      %p198 = scmp.ne.s32.totalorder %s183, %s197
      %p199 = scmp.eq.s32.totalorder %s26, 0
      %p200 = por %p198, %p199
      %s201 = ssub.s32 %s20, %s27
      %p202 = scmp.eq.s32.totalorder %s201, 0
      %s204 = sadd.s32 %s203, 1
      %s205 = scalar_select %p202, %s203, %s204
      %p208 = pneg %p202
      %p209 = scmp.eq.s32.totalorder %s20, 2
      %p210 = por %p208, %p209
      %p211 = scmp.ne.s32.totalorder %s203, %s206
      %p212 = scmp.eq.s32.totalorder %s20, 0
      %p213 = por %p211, %p212
      %p214 = scmp.ne.s32.totalorder %s203, %s206
      %p215 = scmp.eq.s32.totalorder %s25, 2
      %p216 = por %p214, %p215
      %p217 = scmp.ne.s32.totalorder %s206, %s207
      %p218 = scmp.eq.s32.totalorder %s25, 0
      %p219 = por %p217, %p218
      %p220 = scmp.ne.s32.totalorder %s206, %s207
      %p221 = scmp.eq.s32.totalorder %s26, 2
      %p222 = por %p220, %p221
      %p224 = scmp.ne.s32.totalorder %s207, %s223
      %p225 = scmp.eq.s32.totalorder %s26, 0
      %p226 = por %p224, %p225
      %p227 = scmp.le.s32.totalorder 1, %s20
      %p228 = scmp.lt.s32.totalorder %s20, 4
      %p229 = pnand %p227, %p228
      %p230 = pneg %p229
      // Predicated region
      $region9: #{tpu_custom_call.1} parent=5 // pred_check
        _
      $region10: #{tpu_custom_call.1} parent=5 // pred_check_branch
        %232 = sbr.rel (%p229) target = $region12
      $region11: #{tpu_custom_call.1} parent=5 // pred_region
        %s233 = ssub.s32 %s20, 1
        // Predicated region
        $region13: #{tpu_custom_call.1} parent=11 // pred_check
          %p234 = pneg %p67
        $region14: #{tpu_custom_call.1} parent=11 // pred_check_branch
          %236 = sbr.rel (%p234) target = $region16
        $region15: #{tpu_custom_call.1} parent=11 // pred_region
          _
        $region16: #{tpu_custom_call.1} parent=11 // pred_fallthru
          _
        // Predicated region
        $region17: #{tpu_custom_call.1} parent=11 // pred_check
          %p237 = pneg %p88
        $region18: #{tpu_custom_call.1} parent=11 // pred_check_branch
          %239 = sbr.rel (%p237) target = $region20
        $region19: #{tpu_custom_call.1} parent=11 // pred_region
          %s241 = ssub.s32 1024, 1024
          %242 = vsyncadd [#allocation3], %s241
          %s243 = sshll.u32 [#allocation2], 4
          %s244 = int_to_ptr.vmem [resolvable:$true] %s243
          %249 = dma.hbm_to_vmem [thread:$0]  %s2, 1024, %s244, [#allocation3], 64, 64, 4
        $region20: #{tpu_custom_call.1} parent=11 // pred_fallthru
          _
        // Predicated region
        $region21: #{tpu_custom_call.1} parent=11 // pred_check
          %p250 = pneg %p109
        $region22: #{tpu_custom_call.1} parent=11 // pred_check_branch
          %252 = sbr.rel (%p250) target = $region24
        $region23: #{tpu_custom_call.1} parent=11 // pred_region
          %s254 = ssub.s32 3072, 3072
          %255 = vsyncadd [#allocation6], %s254
          %s256 = sshll.u32 [#allocation5], 4
          %s257 = int_to_ptr.vmem [resolvable:$true] %s256
          %262 = dma.hbm_to_vmem [thread:$0]  %s3, 3072, %s257, [#allocation6], 192, 192, 12
        $region24: #{tpu_custom_call.1} parent=11 // pred_fallthru
          _
        // Predicated region
        $region25: #{tpu_custom_call.1} parent=11 // pred_check
          %p263 = pneg %p130
        $region26: #{tpu_custom_call.1} parent=11 // pred_check_branch
          %265 = sbr.rel (%p263) target = $region28
        $region27: #{tpu_custom_call.1} parent=11 // pred_region
          %s267 = ssub.s32 2048, 2048
          %268 = vsyncadd [#allocation6], %s267
          %s269 = sshll.u32 [#allocation7], 4
          %s270 = int_to_ptr.vmem [resolvable:$true] %s269
          %275 = dma.hbm_to_vmem [thread:$0]  %s4, 2048, %s270, [#allocation6], 128, 128, 8
        $region28: #{tpu_custom_call.1} parent=11 // pred_fallthru
          _
        // Predicated region
        $region29: #{tpu_custom_call.1} parent=11 // pred_check
          %p276 = pneg %p151
        $region30: #{tpu_custom_call.1} parent=11 // pred_check_branch
          %278 = sbr.rel (%p276) target = $region32
        $region31: #{tpu_custom_call.1} parent=11 // pred_region
          %s280 = ssub.s32 1024, 1024
          %281 = vsyncadd [#allocation9], %s280
          %s282 = sshll.u32 [#allocation8], 4
          %s283 = int_to_ptr.vmem [resolvable:$true] %s282
          %288 = dma.hbm_to_vmem [thread:$0]  %s5, 1024, %s283, [#allocation9], 64, 64, 4
        $region32: #{tpu_custom_call.1} parent=11 // pred_fallthru
          _
        // Predicated region
        $region33: #{tpu_custom_call.1} parent=11 // pred_check
          %p289 = pneg %p172
        $region34: #{tpu_custom_call.1} parent=11 // pred_check_branch
          %291 = sbr.rel (%p289) target = $region36
        $region35: #{tpu_custom_call.1} parent=11 // pred_region
          %s293 = ssub.s32 1024, 1024
          %294 = vsyncadd [#allocation9], %s293
          %s295 = sshll.u32 [#allocation10], 4
          %s296 = int_to_ptr.vmem [resolvable:$true] %s295
          %301 = dma.hbm_to_vmem [thread:$0]  %s6, 1024, %s296, [#allocation9], 64, 64, 4
        $region36: #{tpu_custom_call.1} parent=11 // pred_fallthru
          _
        // Predicated region
        $region37: #{tpu_custom_call.1} parent=11 // pred_check
          %p302 = pneg %p193
        $region38: #{tpu_custom_call.1} parent=11 // pred_check_branch
          %304 = sbr.rel (%p302) target = $region40
        $region39: #{tpu_custom_call.1} parent=11 // pred_region
          _
        $region40: #{tpu_custom_call.1} parent=11 // pred_fallthru
          _
      $region12: #{tpu_custom_call.1} parent=5 // pred_fallthru
        _
      %p305 = scmp.lt.s32.totalorder %s20, 3
      // Predicated region
      $region41: #{tpu_custom_call.1} parent=5 // pred_check
        %p306 = pneg %p305
      $region42: #{tpu_custom_call.1} parent=5 // pred_check_branch
        %308 = sbr.rel (%p306) target = $region44
      $region43: #{tpu_custom_call.1} parent=5 // pred_region
        // Predicated region
        $region45: #{tpu_custom_call.1} parent=43 // pred_check
          %p309 = pneg %p40
        $region46: #{tpu_custom_call.1} parent=43 // pred_check_branch
          %311 = sbr.rel (%p309) target = $region48
        $region47: #{tpu_custom_call.1} parent=43 // pred_region
          %s312 = smul.u32 2, %s20
          %p313 = scmp.lt.s32.totalorder %s312, 5
          %s314 = scalar_select %p313, %s312, 5
          %s315 = smul.addr %s314, 4
          %s316 = scalar_lea.vmem %s0, %s315
          %s317 = smul.u32 2, %s20
        $region48: #{tpu_custom_call.1} parent=43 // pred_fallthru
          _
      $region44: #{tpu_custom_call.1} parent=5 // pred_fallthru
        _
      %p318 = scmp.le.s32.totalorder 1, %s20
      %p319 = scmp.lt.s32.totalorder %s20, 4
      %p320 = pnand %p318, %p319
      %p321 = pneg %p320
      // Predicated region
      $region49: #{tpu_custom_call.1} parent=5 // pred_check
        _
      $region50: #{tpu_custom_call.1} parent=5 // pred_check_branch
        %323 = sbr.rel (%p320) target = $region52
      $region51: #{tpu_custom_call.1} parent=5 // pred_region
        %s324 = ssub.s32 %s20, 1
        // Predicated region
        $region53: #{tpu_custom_call.1} parent=51 // pred_check
          %p325 = pneg %p88
        $region54: #{tpu_custom_call.1} parent=51 // pred_check_branch
          %327 = sbr.rel (%p325) target = $region56
        $region55: #{tpu_custom_call.1} parent=51 // pred_region
          %328 = dma.done [#allocation3], 1024
        $region56: #{tpu_custom_call.1} parent=51 // pred_fallthru
          _
        // Predicated region
        $region57: #{tpu_custom_call.1} parent=51 // pred_check
          %p329 = pneg %p109
        $region58: #{tpu_custom_call.1} parent=51 // pred_check_branch
          %331 = sbr.rel (%p329) target = $region60
        $region59: #{tpu_custom_call.1} parent=51 // pred_region
          %332 = dma.done [#allocation6], 3072
        $region60: #{tpu_custom_call.1} parent=51 // pred_fallthru
          _
        // Predicated region
        $region61: #{tpu_custom_call.1} parent=51 // pred_check
          %p333 = pneg %p130
        $region62: #{tpu_custom_call.1} parent=51 // pred_check_branch
          %335 = sbr.rel (%p333) target = $region64
        $region63: #{tpu_custom_call.1} parent=51 // pred_region
          %336 = dma.done [#allocation6], 2048
        $region64: #{tpu_custom_call.1} parent=51 // pred_fallthru
          _
        // Predicated region
        $region65: #{tpu_custom_call.1} parent=51 // pred_check
          %p337 = pneg %p151
        $region66: #{tpu_custom_call.1} parent=51 // pred_check_branch
          %339 = sbr.rel (%p337) target = $region68
        $region67: #{tpu_custom_call.1} parent=51 // pred_region
          %340 = dma.done [#allocation9], 1024
        $region68: #{tpu_custom_call.1} parent=51 // pred_fallthru
          _
        // Predicated region
        $region69: #{tpu_custom_call.1} parent=51 // pred_check
          %p341 = pneg %p172
        $region70: #{tpu_custom_call.1} parent=51 // pred_check_branch
          %343 = sbr.rel (%p341) target = $region72
        $region71: #{tpu_custom_call.1} parent=51 // pred_region
          %344 = dma.done [#allocation9], 1024
        $region72: #{tpu_custom_call.1} parent=51 // pred_fallthru
          _
        %s345 = smul.u32 2, %s25
        %p346 = scmp.lt.s32.totalorder %s345, 5
        %s347 = scalar_select %p346, %s345, 5
        %s348 = smul.addr %s347, 4
        %s349 = scalar_lea.vmem %s0, %s348
        %p350 = pneg %p46
        %p351 = pneg %p43
        %p352 = pneg %p67
        %p353 = pneg %p64
        %p354 = pneg %p88
        %p355 = pneg %p85
        %p356 = pneg %p109
        %p357 = pneg %p106
        %p358 = pneg %p130
        %p359 = pneg %p127
        %p360 = pneg %p151
        %p361 = pneg %p148
        %p362 = pneg %p172
        %p363 = pneg %p169
        %p364 = pneg %p193
        %p365 = pneg %p190
        %p366 = pneg %p219
        %p367 = pneg %p216
        %s368 = sand.u32 %s206, 1
        %s369 = scalar_lea.sflag [#allocation4], %s368
        %s370 = sand.u32 %s206, 1
        %s371 = smul.addr %s370, 8
        %s372 = scalar_lea.vmem [#allocation11], %s371
        %s373 = smul.u32 2, %s25
        %p374 = scmp.lt.s32.totalorder %s373, 5
        %s375 = scalar_select %p374, %s373, 5
        %s376 = smul.addr %s375, 4
        %s377 = scalar_lea.vmem %s0, %s376
        %s378 = smul.u32 2, %s25
        %s379 = smul.u32 2, %s25
        %v381 = vld [vmem:[%s7] sm:$0xff]
        %v382 = vld [vmem:[%s377] sm:$0xf]
        %v383 = vld [vmem:[%s377 + $0x4] sm:$0xf]
        %v384 = vld [vmem:[%s1] sm:$0xf]
        %v385 = vld [vmem:[%s1 + $0x4] sm:$0xf]
        %v386 = vlaneseq
        %v387 = vshrl.u32 %v386, 7
        %v388 = vsub.s32 0, %v387
        %v389 = vrot.slane %v381, %v388
        %v392 = vunpack.c.l.b16 %v382
        %v393 = vunpack.c.l.b16 %v383
        %v394 = vpack.c.b16 %v393, %v392
        %v397 = vunpack.c.l.b16 %v384
        %v398 = vunpack.c.l.b16 %v385
        %v399 = vpack.c.b16 %v398, %v397
        %vm401 = vcmask 130048
        %v403 = vsel %vm401, %v394, 0
        %405 = vmatprep.subr.bf16.mxu0 0
        %406 = vmatpush1.bf16.msra.mxu0 0
        %407 = vmatprep.subr.bf16.mxu0 0
        %408 = vmatpush1.bf16.msra.mxu0 0
        %409 = vmatprep.subr.bf16.mxu0 0
        %410 = vmatpush1.bf16.msra.mxu0 0
        %411 = vmatprep.subr.bf16.mxu0 0
        %412 = vmatpush1.bf16.msra.mxu0 0
        %413 = vmatprep.subr.bf16.mxu0 0
        %414 = vmatpush1.bf16.msra.mxu0 0
        %415 = vmatprep.subr.bf16.mxu0 0
        %416 = vmatpush1.bf16.msra.mxu0 0
        %417 = vmatprep.subr.bf16.mxu0 0
        %418 = vmatpush1.bf16.msra.mxu0 0
        %419 = vmatprep.subr.bf16.mxu0 0
        %420 = vmatpush1.bf16.msra.mxu0 %v399
        %421 = vmatprep.subr.bf16.mxu0 0
        %422 = vmatpush2.bf16.msra.mxu0 0
        %423 = vmatprep.subr.bf16.mxu0 0
        %424 = vmatpush2.bf16.msra.mxu0 0
        %425 = vmatprep.subr.bf16.mxu0 0
        %426 = vmatpush2.bf16.msra.mxu0 0
        %427 = vmatprep.subr.bf16.mxu0 0
        %428 = vmatpush2.bf16.msra.mxu0 0
        %429 = vmatprep.subr.bf16.mxu0 0
        %430 = vmatpush2.bf16.msra.mxu0 0
        %431 = vmatprep.subr.bf16.mxu0 0
        %432 = vmatpush2.bf16.msra.mxu0 0
        %433 = vmatprep.subr.bf16.mxu0 0
        %434 = vmatpush2.bf16.msra.mxu0 0
        %435 = vmatprep.subr.bf16.mxu0 0
        %436 = vmatpush2.bf16.msra.mxu0 0
        %437 = vmatprep.mubr.bf16.mxu0 0
        %438 = vmatmul.mubr.bf16.gmra.mxu0 %v403
        %v439 = vpop.f32.mrf.mxu0
        %v440 = vadd.f32 %v389, %v439
        %v441 = vpop.f32.mrf.mxu0
        %v442 = vpop.f32.mrf.mxu0
        %v443 = vadd.f32 %v389, %v442
        %v444 = vpop.f32.mrf.mxu0
        %445 = vdwg.mxu0
        %v446 = vmax.f32 %v440, 0.0
        %v447 = vmax.f32 %v443, 0.0
        %v448 = vpack.c.bf16 %v447, %v446
        %v449 = vld [vmem:[#allocation2] sm:$0xf]
        %v450 = vld [vmem:[#allocation2 + $0x4] sm:$0xf]
        %v451 = vld [vmem:[#allocation2 + $0x8] sm:$0xf]
        %v452 = vld [vmem:[#allocation2 + $0xc] sm:$0xf]
        %v453 = vld [vmem:[#allocation2 + $0x10] sm:$0xf]
        %v454 = vld [vmem:[#allocation2 + $0x14] sm:$0xf]
        %v455 = vld [vmem:[#allocation2 + $0x18] sm:$0xf]
        %v456 = vld [vmem:[#allocation2 + $0x1c] sm:$0xf]
        %v457 = vld [vmem:[#allocation2 + $0x20] sm:$0xf]
        %v458 = vld [vmem:[#allocation2 + $0x24] sm:$0xf]
        %v459 = vld [vmem:[#allocation2 + $0x28] sm:$0xf]
        %v460 = vld [vmem:[#allocation2 + $0x2c] sm:$0xf]
        %v461 = vld [vmem:[#allocation2 + $0x30] sm:$0xf]
        %v462 = vld [vmem:[#allocation2 + $0x34] sm:$0xf]
        %v463 = vld [vmem:[#allocation2 + $0x38] sm:$0xf]
        %v464 = vld [vmem:[#allocation2 + $0x3c] sm:$0xf]
        %v465 = vlaneseq
        %v466 = vshrl.u32 %v465, 7
        %v467 = vsub.s32 1, %v466
        %v468 = vrot.slane %v381, %v467
        %v485 = vunpack.c.l.b16 %v449
        %v486 = vunpack.c.l.b16 %v450
        %v487 = vunpack.c.l.b16 %v451
        %v488 = vunpack.c.l.b16 %v452
        %v489 = vunpack.c.l.b16 %v453
        %v490 = vunpack.c.l.b16 %v454
        %v491 = vunpack.c.l.b16 %v455
        %v492 = vunpack.c.l.b16 %v456
        %v493 = vunpack.c.l.b16 %v457
        %v494 = vunpack.c.l.b16 %v458
        %v495 = vunpack.c.l.b16 %v459
        %v496 = vunpack.c.l.b16 %v460
        %v497 = vunpack.c.l.b16 %v461
        %v498 = vunpack.c.l.b16 %v462
        %v499 = vunpack.c.l.b16 %v463
        %v500 = vunpack.c.l.b16 %v464
        %v501 = vpack.c.b16 %v486, %v485
        %v502 = vpack.c.b16 %v488, %v487
        %v503 = vpack.c.b16 %v490, %v489
        %v504 = vpack.c.b16 %v492, %v491
        %v505 = vpack.c.b16 %v494, %v493
        %v506 = vpack.c.b16 %v496, %v495
        %v507 = vpack.c.b16 %v498, %v497
        %v508 = vpack.c.b16 %v500, %v499
        %517 = vmatprep.subr.bf16.mxu0 0
        %518 = vmatpush1.bf16.msra.mxu0 %v508
        %519 = vmatprep.subr.bf16.mxu0 0
        %520 = vmatpush1.bf16.msra.mxu0 %v507
        %521 = vmatprep.subr.bf16.mxu0 0
        %522 = vmatpush1.bf16.msra.mxu0 %v506
        %523 = vmatprep.subr.bf16.mxu0 0
        %524 = vmatpush1.bf16.msra.mxu0 %v505
        %525 = vmatprep.subr.bf16.mxu0 0
        %526 = vmatpush1.bf16.msra.mxu0 %v504
        %527 = vmatprep.subr.bf16.mxu0 0
        %528 = vmatpush1.bf16.msra.mxu0 %v503
        %529 = vmatprep.subr.bf16.mxu0 0
        %530 = vmatpush1.bf16.msra.mxu0 %v502
        %531 = vmatprep.subr.bf16.mxu0 0
        %532 = vmatpush1.bf16.msra.mxu0 %v501
        %533 = vmatprep.subr.bf16.mxu0 0
        %534 = vmatpush2.bf16.msra.mxu0 0
        %535 = vmatprep.subr.bf16.mxu0 0
        %536 = vmatpush2.bf16.msra.mxu0 0
        %537 = vmatprep.subr.bf16.mxu0 0
        %538 = vmatpush2.bf16.msra.mxu0 0
        %539 = vmatprep.subr.bf16.mxu0 0
        %540 = vmatpush2.bf16.msra.mxu0 0
        %541 = vmatprep.subr.bf16.mxu0 0
        %542 = vmatpush2.bf16.msra.mxu0 0
        %543 = vmatprep.subr.bf16.mxu0 0
        %544 = vmatpush2.bf16.msra.mxu0 0
        %545 = vmatprep.subr.bf16.mxu0 0
        %546 = vmatpush2.bf16.msra.mxu0 0
        %547 = vmatprep.subr.bf16.mxu0 0
        %548 = vmatpush2.bf16.msra.mxu0 0
        %549 = vmatprep.mubr.bf16.mxu0 0
        %550 = vmatmul.mubr.bf16.gmra.mxu0 %v448
        %v551 = vpop.f32.mrf.mxu0
        %v552 = vadd.f32 %v468, %v551
        %v553 = vpop.f32.mrf.mxu0
        %v554 = vpop.f32.mrf.mxu0
        %v555 = vadd.f32 %v468, %v554
        %v556 = vpop.f32.mrf.mxu0
        %557 = vdwg.mxu0
        %v558 = vpack.c.bf16 %v555, %v552
        %v559 = vld [vmem:[#allocation5] sm:$0xff]
        %v560 = vld [vmem:[#allocation5 + $0x8] sm:$0xf]
        %v561 = vld [vmem:[#allocation5 + $0xc] sm:$0xff]
        %v562 = vld [vmem:[#allocation5 + $0x14] sm:$0xf]
        %v563 = vld [vmem:[#allocation5 + $0x18] sm:$0xff]
        %v564 = vld [vmem:[#allocation5 + $0x20] sm:$0xf]
        %v565 = vld [vmem:[#allocation5 + $0x24] sm:$0xff]
        %v566 = vld [vmem:[#allocation5 + $0x2c] sm:$0xf]
        %v567 = vld [vmem:[#allocation5 + $0x30] sm:$0xff]
        %v568 = vld [vmem:[#allocation5 + $0x38] sm:$0xf]
        %v569 = vld [vmem:[#allocation5 + $0x3c] sm:$0xff]
        %v570 = vld [vmem:[#allocation5 + $0x44] sm:$0xf]
        %v571 = vld [vmem:[#allocation5 + $0x48] sm:$0xff]
        %v572 = vld [vmem:[#allocation5 + $0x50] sm:$0xf]
        %v573 = vld [vmem:[#allocation5 + $0x54] sm:$0xff]
        %v574 = vld [vmem:[#allocation5 + $0x5c] sm:$0xf]
        %v575 = vld [vmem:[#allocation5 + $0x60] sm:$0xff]
        %v576 = vld [vmem:[#allocation5 + $0x68] sm:$0xf]
        %v577 = vld [vmem:[#allocation5 + $0x6c] sm:$0xff]
        %v578 = vld [vmem:[#allocation5 + $0x74] sm:$0xf]
        %v579 = vld [vmem:[#allocation5 + $0x78] sm:$0xff]
        %v580 = vld [vmem:[#allocation5 + $0x80] sm:$0xf]
        %v581 = vld [vmem:[#allocation5 + $0x84] sm:$0xff]
        %v582 = vld [vmem:[#allocation5 + $0x8c] sm:$0xf]
        %v583 = vld [vmem:[#allocation5 + $0x90] sm:$0xff]
        %v584 = vld [vmem:[#allocation5 + $0x98] sm:$0xf]
        %v585 = vld [vmem:[#allocation5 + $0x9c] sm:$0xff]
        %v586 = vld [vmem:[#allocation5 + $0xa4] sm:$0xf]
        %v587 = vld [vmem:[#allocation5 + $0xa8] sm:$0xff]
        %v588 = vld [vmem:[#allocation5 + $0xb0] sm:$0xf]
        %v589 = vld [vmem:[#allocation5 + $0xb4] sm:$0xff]
        %v590 = vld [vmem:[#allocation5 + $0xbc] sm:$0xf]
        %v623 = vunpack.c.l.b16 %v559
        %v624 = vunpack.c.h.b16 %v559
        %v625 = vunpack.c.l.b16 %v560
        %v626 = vunpack.c.l.b16 %v561
        %v627 = vunpack.c.h.b16 %v561
        %v628 = vunpack.c.l.b16 %v562
        %v629 = vunpack.c.l.b16 %v563
        %v630 = vunpack.c.h.b16 %v563
        %v631 = vunpack.c.l.b16 %v564
        %v632 = vunpack.c.l.b16 %v565
        %v633 = vunpack.c.h.b16 %v565
        %v634 = vunpack.c.l.b16 %v566
        %v635 = vunpack.c.l.b16 %v567
        %v636 = vunpack.c.h.b16 %v567
        %v637 = vunpack.c.l.b16 %v568
        %v638 = vunpack.c.l.b16 %v569
        %v639 = vunpack.c.h.b16 %v569
        %v640 = vunpack.c.l.b16 %v570
        %v641 = vunpack.c.l.b16 %v571
        %v642 = vunpack.c.h.b16 %v571
        %v643 = vunpack.c.l.b16 %v572
        %v644 = vunpack.c.l.b16 %v573
        %v645 = vunpack.c.h.b16 %v573
        %v646 = vunpack.c.l.b16 %v574
        %v647 = vunpack.c.l.b16 %v575
        %v648 = vunpack.c.h.b16 %v575
        %v649 = vunpack.c.l.b16 %v576
        %v650 = vunpack.c.l.b16 %v577
        %v651 = vunpack.c.h.b16 %v577
        %v652 = vunpack.c.l.b16 %v578
        %v653 = vunpack.c.l.b16 %v579
        %v654 = vunpack.c.h.b16 %v579
        %v655 = vunpack.c.l.b16 %v580
        %v656 = vunpack.c.l.b16 %v581
        %v657 = vunpack.c.h.b16 %v581
        %v658 = vunpack.c.l.b16 %v582
        %v659 = vunpack.c.l.b16 %v583
        %v660 = vunpack.c.h.b16 %v583
        %v661 = vunpack.c.l.b16 %v584
        %v662 = vunpack.c.l.b16 %v585
        %v663 = vunpack.c.h.b16 %v585
        %v664 = vunpack.c.l.b16 %v586
        %v665 = vunpack.c.l.b16 %v587
        %v666 = vunpack.c.h.b16 %v587
        %v667 = vunpack.c.l.b16 %v588
        %v668 = vunpack.c.l.b16 %v589
        %v669 = vunpack.c.h.b16 %v589
        %v670 = vunpack.c.l.b16 %v590
        %v671 = vpack.c.b16 %v626, %v623
        %v672 = vpack.c.b16 %v627, %v624
        %v673 = vpack.c.b16 %v628, %v625
        %v674 = vpack.c.b16 %v632, %v629
        %v675 = vpack.c.b16 %v633, %v630
        %v676 = vpack.c.b16 %v634, %v631
        %v677 = vpack.c.b16 %v638, %v635
        %v678 = vpack.c.b16 %v639, %v636
        %v679 = vpack.c.b16 %v640, %v637
        %v680 = vpack.c.b16 %v644, %v641
        %v681 = vpack.c.b16 %v645, %v642
        %v682 = vpack.c.b16 %v646, %v643
        %v683 = vpack.c.b16 %v650, %v647
        %v684 = vpack.c.b16 %v651, %v648
        %v685 = vpack.c.b16 %v652, %v649
        %v686 = vpack.c.b16 %v656, %v653
        %v687 = vpack.c.b16 %v657, %v654
        %v688 = vpack.c.b16 %v658, %v655
        %v689 = vpack.c.b16 %v662, %v659
        %v690 = vpack.c.b16 %v663, %v660
        %v691 = vpack.c.b16 %v664, %v661
        %v692 = vpack.c.b16 %v668, %v665
        %v693 = vpack.c.b16 %v669, %v666
        %v694 = vpack.c.b16 %v670, %v667
        %719 = vmatprep.subr.bf16.mxu0 %v693
        %720 = vmatpush1.bf16.msra.mxu0 %v692
        %721 = vmatprep.subr.bf16.mxu0 %v690
        %722 = vmatpush1.bf16.msra.mxu0 %v689
        %723 = vmatprep.subr.bf16.mxu0 %v687
        %724 = vmatpush1.bf16.msra.mxu0 %v686
        %725 = vmatprep.subr.bf16.mxu0 %v684
        %726 = vmatpush1.bf16.msra.mxu0 %v683
        %727 = vmatprep.subr.bf16.mxu0 %v681
        %728 = vmatpush1.bf16.msra.mxu0 %v680
        %729 = vmatprep.subr.bf16.mxu0 %v678
        %730 = vmatpush1.bf16.msra.mxu0 %v677
        %731 = vmatprep.subr.bf16.mxu0 %v675
        %732 = vmatpush1.bf16.msra.mxu0 %v674
        %733 = vmatprep.subr.bf16.mxu0 %v672
        %734 = vmatpush1.bf16.msra.mxu0 %v671
        %735 = vmatprep.subr.bf16.mxu0 0
        %736 = vmatpush2.bf16.msra.mxu0 0
        %737 = vmatprep.subr.bf16.mxu0 0
        %738 = vmatpush2.bf16.msra.mxu0 0
        %739 = vmatprep.subr.bf16.mxu0 0
        %740 = vmatpush2.bf16.msra.mxu0 0
        %741 = vmatprep.subr.bf16.mxu0 0
        %742 = vmatpush2.bf16.msra.mxu0 0
        %743 = vmatprep.subr.bf16.mxu0 0
        %744 = vmatpush2.bf16.msra.mxu0 0
        %745 = vmatprep.subr.bf16.mxu0 0
        %746 = vmatpush2.bf16.msra.mxu0 0
        %747 = vmatprep.subr.bf16.mxu0 0
        %748 = vmatpush2.bf16.msra.mxu0 0
        %749 = vmatprep.subr.bf16.mxu0 0
        %750 = vmatpush2.bf16.msra.mxu0 0
        %751 = vmatprep.mubr.bf16.mxu0 0
        %752 = vmatmul.mubr.bf16.gmra.mxu0 %v558
        %v753 = vpop.f32.mrf.mxu0
        %v754 = vadd.f32 0.0, %v753
        %v755 = vpop.f32.mrf.mxu0
        %v756 = vadd.f32 0.0, %v755
        %v757 = vpop.f32.mrf.mxu0
        %v758 = vadd.f32 0.0, %v757
        %v759 = vpop.f32.mrf.mxu0
        %v760 = vadd.f32 0.0, %v759
        %761 = vdwg.mxu0
        %762 = vmatprep.subr.bf16.mxu0 0
        %763 = vmatpush1.bf16.msra.mxu0 %v694
        %764 = vmatprep.subr.bf16.mxu0 0
        %765 = vmatpush1.bf16.msra.mxu0 %v691
        %766 = vmatprep.subr.bf16.mxu0 0
        %767 = vmatpush1.bf16.msra.mxu0 %v688
        %768 = vmatprep.subr.bf16.mxu0 0
        %769 = vmatpush1.bf16.msra.mxu0 %v685
        %770 = vmatprep.subr.bf16.mxu0 0
        %771 = vmatpush1.bf16.msra.mxu0 %v682
        %772 = vmatprep.subr.bf16.mxu0 0
        %773 = vmatpush1.bf16.msra.mxu0 %v679
        %774 = vmatprep.subr.bf16.mxu0 0
        %775 = vmatpush1.bf16.msra.mxu0 %v676
        %776 = vmatprep.subr.bf16.mxu0 0
        %777 = vmatpush1.bf16.msra.mxu0 %v673
        %778 = vmatprep.subr.bf16.mxu0 0
        %779 = vmatpush2.bf16.msra.mxu0 0
        %780 = vmatprep.subr.bf16.mxu0 0
        %781 = vmatpush2.bf16.msra.mxu0 0
        %782 = vmatprep.subr.bf16.mxu0 0
        %783 = vmatpush2.bf16.msra.mxu0 0
        %784 = vmatprep.subr.bf16.mxu0 0
        %785 = vmatpush2.bf16.msra.mxu0 0
        %786 = vmatprep.subr.bf16.mxu0 0
        %787 = vmatpush2.bf16.msra.mxu0 0
        %788 = vmatprep.subr.bf16.mxu0 0
        %789 = vmatpush2.bf16.msra.mxu0 0
        %790 = vmatprep.subr.bf16.mxu0 0
        %791 = vmatpush2.bf16.msra.mxu0 0
        %792 = vmatprep.subr.bf16.mxu0 0
        %793 = vmatpush2.bf16.msra.mxu0 0
        %794 = vmatprep.mubr.bf16.mxu0 0
        %795 = vmatmul.mubr.bf16.gmra.mxu0 %v558
        %v796 = vpop.f32.mrf.mxu0
        %v797 = vadd.f32 0.0, %v796
        %v798 = vpop.f32.mrf.mxu0
        %v799 = vpop.f32.mrf.mxu0
        %v800 = vadd.f32 0.0, %v799
        %v801 = vpop.f32.mrf.mxu0
        %802 = vdwg.mxu0
        %v803 = vlaneseq
        %v804 = vshrl.u32 %v803, 7
        %v805 = vsub.s32 2, %v804
        %v806 = vrot.slane %v381, %v805
        %v807 = vadd.f32 %v754, %v806
        %v808 = vadd.f32 %v758, %v806
        %v809 = vadd.f32 %v807, 3.0
        %v810 = vadd.f32 %v808, 3.0
        %v811 = vmax.f32 %v809, 0.0
        %v812 = vmax.f32 %v810, 0.0
        %v813 = vmin.f32 %v811, 6.0
        %v814 = vmin.f32 %v812, 6.0
        %v815 = vmul.f32 %v807, %v813
        %v816 = vmul.f32 %v808, %v814
        %v817 = vmul.f32 %v815, 0.16666667
        %v818 = vmul.f32 %v816, 0.16666667
        %v819 = vpack.c.bf16 %v818, %v817
        %v820 = vld [vmem:[#allocation7] sm:$0xff]
        %v821 = vld [vmem:[#allocation7 + $0x8] sm:$0xff]
        %v822 = vld [vmem:[#allocation7 + $0x10] sm:$0xff]
        %v823 = vld [vmem:[#allocation7 + $0x18] sm:$0xff]
        %v824 = vld [vmem:[#allocation7 + $0x20] sm:$0xff]
        %v825 = vld [vmem:[#allocation7 + $0x28] sm:$0xff]
        %v826 = vld [vmem:[#allocation7 + $0x30] sm:$0xff]
        %v827 = vld [vmem:[#allocation7 + $0x38] sm:$0xff]
        %v828 = vld [vmem:[#allocation7 + $0x40] sm:$0xff]
        %v829 = vld [vmem:[#allocation7 + $0x48] sm:$0xff]
        %v830 = vld [vmem:[#allocation7 + $0x50] sm:$0xff]
        %v831 = vld [vmem:[#allocation7 + $0x58] sm:$0xff]
        %v832 = vld [vmem:[#allocation7 + $0x60] sm:$0xff]
        %v833 = vld [vmem:[#allocation7 + $0x68] sm:$0xff]
        %v834 = vld [vmem:[#allocation7 + $0x70] sm:$0xff]
        %v835 = vld [vmem:[#allocation7 + $0x78] sm:$0xff]
        %v852 = vunpack.c.l.b16 %v820
        %v853 = vunpack.c.h.b16 %v820
        %v854 = vunpack.c.l.b16 %v821
        %v855 = vunpack.c.h.b16 %v821
        %v856 = vunpack.c.l.b16 %v822
        %v857 = vunpack.c.h.b16 %v822
        %v858 = vunpack.c.l.b16 %v823
        %v859 = vunpack.c.h.b16 %v823
        %v860 = vunpack.c.l.b16 %v824
        %v861 = vunpack.c.h.b16 %v824
        %v862 = vunpack.c.l.b16 %v825
        %v863 = vunpack.c.h.b16 %v825
        %v864 = vunpack.c.l.b16 %v826
        %v865 = vunpack.c.h.b16 %v826
        %v866 = vunpack.c.l.b16 %v827
        %v867 = vunpack.c.h.b16 %v827
        %v868 = vunpack.c.l.b16 %v828
        %v869 = vunpack.c.h.b16 %v828
        %v870 = vunpack.c.l.b16 %v829
        %v871 = vunpack.c.h.b16 %v829
        %v872 = vunpack.c.l.b16 %v830
        %v873 = vunpack.c.h.b16 %v830
        %v874 = vunpack.c.l.b16 %v831
        %v875 = vunpack.c.h.b16 %v831
        %v876 = vunpack.c.l.b16 %v832
        %v877 = vunpack.c.h.b16 %v832
        %v878 = vunpack.c.l.b16 %v833
        %v879 = vunpack.c.h.b16 %v833
        %v880 = vunpack.c.l.b16 %v834
        %v881 = vunpack.c.h.b16 %v834
        %v882 = vunpack.c.l.b16 %v835
        %v883 = vunpack.c.h.b16 %v835
        %v884 = vpack.c.b16 %v854, %v852
        %v885 = vpack.c.b16 %v855, %v853
        %v886 = vpack.c.b16 %v858, %v856
        %v887 = vpack.c.b16 %v859, %v857
        %v888 = vpack.c.b16 %v862, %v860
        %v889 = vpack.c.b16 %v863, %v861
        %v890 = vpack.c.b16 %v866, %v864
        %v891 = vpack.c.b16 %v867, %v865
        %v892 = vpack.c.b16 %v870, %v868
        %v893 = vpack.c.b16 %v871, %v869
        %v894 = vpack.c.b16 %v874, %v872
        %v895 = vpack.c.b16 %v875, %v873
        %v896 = vpack.c.b16 %v878, %v876
        %v897 = vpack.c.b16 %v879, %v877
        %v898 = vpack.c.b16 %v882, %v880
        %v899 = vpack.c.b16 %v883, %v881
        %916 = vmatprep.subr.bf16.mxu0 %v899
        %917 = vmatpush1.bf16.msra.mxu0 %v898
        %918 = vmatprep.subr.bf16.mxu0 %v897
        %919 = vmatpush1.bf16.msra.mxu0 %v896
        %920 = vmatprep.subr.bf16.mxu0 %v895
        %921 = vmatpush1.bf16.msra.mxu0 %v894
        %922 = vmatprep.subr.bf16.mxu0 %v893
        %923 = vmatpush1.bf16.msra.mxu0 %v892
        %924 = vmatprep.subr.bf16.mxu0 %v891
        %925 = vmatpush1.bf16.msra.mxu0 %v890
        %926 = vmatprep.subr.bf16.mxu0 %v889
        %927 = vmatpush1.bf16.msra.mxu0 %v888
        %928 = vmatprep.subr.bf16.mxu0 %v887
        %929 = vmatpush1.bf16.msra.mxu0 %v886
        %930 = vmatprep.subr.bf16.mxu0 %v885
        %931 = vmatpush1.bf16.msra.mxu0 %v884
        %932 = vmatprep.subr.bf16.mxu0 0
        %933 = vmatpush2.bf16.msra.mxu0 0
        %934 = vmatprep.subr.bf16.mxu0 0
        %935 = vmatpush2.bf16.msra.mxu0 0
        %936 = vmatprep.subr.bf16.mxu0 0
        %937 = vmatpush2.bf16.msra.mxu0 0
        %938 = vmatprep.subr.bf16.mxu0 0
        %939 = vmatpush2.bf16.msra.mxu0 0
        %940 = vmatprep.subr.bf16.mxu0 0
        %941 = vmatpush2.bf16.msra.mxu0 0
        %942 = vmatprep.subr.bf16.mxu0 0
        %943 = vmatpush2.bf16.msra.mxu0 0
        %944 = vmatprep.subr.bf16.mxu0 0
        %945 = vmatpush2.bf16.msra.mxu0 0
        %946 = vmatprep.subr.bf16.mxu0 0
        %947 = vmatpush2.bf16.msra.mxu0 0
        %948 = vmatprep.mubr.bf16.mxu0 0
        %949 = vmatmul.mubr.bf16.gmra.mxu0 %v819
        %v950 = vpop.f32.mrf.mxu0
        %v951 = vadd.f32 0.0, %v950
        %v952 = vpop.f32.mrf.mxu0
        %v953 = vadd.f32 0.0, %v952
        %v954 = vpop.f32.mrf.mxu0
        %v955 = vadd.f32 0.0, %v954
        %v956 = vpop.f32.mrf.mxu0
        %v957 = vadd.f32 0.0, %v956
        %958 = vdwg.mxu0
        %v959 = vadd.f32 %v756, %v951
        %v960 = vadd.f32 %v760, %v955
        %v961 = vlaneseq
        %v962 = vshrl.u32 %v961, 7
        %v963 = vsub.s32 3, %v962
        %v964 = vrot.slane %v381, %v963
        %v965 = vadd.f32 %v959, %v964
        %v966 = vadd.f32 %v960, %v964
        %v967 = vadd.f32 %v965, 3.0
        %v968 = vadd.f32 %v966, 3.0
        %v969 = vmax.f32 %v967, 0.0
        %v970 = vmax.f32 %v968, 0.0
        %v971 = vmin.f32 %v969, 6.0
        %v972 = vmin.f32 %v970, 6.0
        %v973 = vmul.f32 %v965, %v971
        %v974 = vmul.f32 %v966, %v972
        %v975 = vmul.f32 %v973, 0.16666667
        %v976 = vmul.f32 %v974, 0.16666667
        %v977 = vpack.c.bf16 %v976, %v975
        %v978 = vadd.f32 %v797, %v953
        %v979 = vadd.f32 %v800, %v957
        %v980 = vld [vmem:[#allocation8] sm:$0xf]
        %v981 = vld [vmem:[#allocation8 + $0x4] sm:$0xf]
        %v982 = vld [vmem:[#allocation8 + $0x8] sm:$0xf]
        %v983 = vld [vmem:[#allocation8 + $0xc] sm:$0xf]
        %v984 = vld [vmem:[#allocation8 + $0x10] sm:$0xf]
        %v985 = vld [vmem:[#allocation8 + $0x14] sm:$0xf]
        %v986 = vld [vmem:[#allocation8 + $0x18] sm:$0xf]
        %v987 = vld [vmem:[#allocation8 + $0x1c] sm:$0xf]
        %v988 = vld [vmem:[#allocation8 + $0x20] sm:$0xf]
        %v989 = vld [vmem:[#allocation8 + $0x24] sm:$0xf]
        %v990 = vld [vmem:[#allocation8 + $0x28] sm:$0xf]
        %v991 = vld [vmem:[#allocation8 + $0x2c] sm:$0xf]
        %v992 = vld [vmem:[#allocation8 + $0x30] sm:$0xf]
        %v993 = vld [vmem:[#allocation8 + $0x34] sm:$0xf]
        %v994 = vld [vmem:[#allocation8 + $0x38] sm:$0xf]
        %v995 = vld [vmem:[#allocation8 + $0x3c] sm:$0xf]
        %v1012 = vunpack.c.l.b16 %v980
        %v1013 = vunpack.c.l.b16 %v981
        %v1014 = vunpack.c.l.b16 %v982
        %v1015 = vunpack.c.l.b16 %v983
        %v1016 = vunpack.c.l.b16 %v984
        %v1017 = vunpack.c.l.b16 %v985
        %v1018 = vunpack.c.l.b16 %v986
        %v1019 = vunpack.c.l.b16 %v987
        %v1020 = vunpack.c.l.b16 %v988
        %v1021 = vunpack.c.l.b16 %v989
        %v1022 = vunpack.c.l.b16 %v990
        %v1023 = vunpack.c.l.b16 %v991
        %v1024 = vunpack.c.l.b16 %v992
        %v1025 = vunpack.c.l.b16 %v993
        %v1026 = vunpack.c.l.b16 %v994
        %v1027 = vunpack.c.l.b16 %v995
        %v1028 = vpack.c.b16 %v1013, %v1012
        %v1029 = vpack.c.b16 %v1015, %v1014
        %v1030 = vpack.c.b16 %v1017, %v1016
        %v1031 = vpack.c.b16 %v1019, %v1018
        %v1032 = vpack.c.b16 %v1021, %v1020
        %v1033 = vpack.c.b16 %v1023, %v1022
        %v1034 = vpack.c.b16 %v1025, %v1024
        %v1035 = vpack.c.b16 %v1027, %v1026
        %1044 = vmatprep.subr.bf16.mxu0 0
        %1045 = vmatpush1.bf16.msra.mxu0 %v1035
        %1046 = vmatprep.subr.bf16.mxu0 0
        %1047 = vmatpush1.bf16.msra.mxu0 %v1034
        %1048 = vmatprep.subr.bf16.mxu0 0
        %1049 = vmatpush1.bf16.msra.mxu0 %v1033
        %1050 = vmatprep.subr.bf16.mxu0 0
        %1051 = vmatpush1.bf16.msra.mxu0 %v1032
        %1052 = vmatprep.subr.bf16.mxu0 0
        %1053 = vmatpush1.bf16.msra.mxu0 %v1031
        %1054 = vmatprep.subr.bf16.mxu0 0
        %1055 = vmatpush1.bf16.msra.mxu0 %v1030
        %1056 = vmatprep.subr.bf16.mxu0 0
        %1057 = vmatpush1.bf16.msra.mxu0 %v1029
        %1058 = vmatprep.subr.bf16.mxu0 0
        %1059 = vmatpush1.bf16.msra.mxu0 %v1028
        %1060 = vmatprep.subr.bf16.mxu0 0
        %1061 = vmatpush2.bf16.msra.mxu0 0
        %1062 = vmatprep.subr.bf16.mxu0 0
        %1063 = vmatpush2.bf16.msra.mxu0 0
        %1064 = vmatprep.subr.bf16.mxu0 0
        %1065 = vmatpush2.bf16.msra.mxu0 0
        %1066 = vmatprep.subr.bf16.mxu0 0
        %1067 = vmatpush2.bf16.msra.mxu0 0
        %1068 = vmatprep.subr.bf16.mxu0 0
        %1069 = vmatpush2.bf16.msra.mxu0 0
        %1070 = vmatprep.subr.bf16.mxu0 0
        %1071 = vmatpush2.bf16.msra.mxu0 0
        %1072 = vmatprep.subr.bf16.mxu0 0
        %1073 = vmatpush2.bf16.msra.mxu0 0
        %1074 = vmatprep.subr.bf16.mxu0 0
        %1075 = vmatpush2.bf16.msra.mxu0 0
        %1076 = vmatprep.mubr.bf16.mxu0 0
        %1077 = vmatmul.mubr.bf16.gmra.mxu0 %v977
        %v1078 = vpop.f32.mrf.mxu0
        %v1079 = vadd.f32 0.0, %v1078
        %v1080 = vpop.f32.mrf.mxu0
        %v1081 = vpop.f32.mrf.mxu0
        %v1082 = vadd.f32 0.0, %v1081
        %v1083 = vpop.f32.mrf.mxu0
        %1084 = vdwg.mxu0
        %v1085 = vadd.f32 %v978, %v1079
        %v1086 = vadd.f32 %v979, %v1082
        %v1087 = vlaneseq
        %v1088 = vshrl.u32 %v1087, 7
        %v1089 = vsub.s32 4, %v1088
        %v1090 = vrot.slane %v381, %v1089
        %v1091 = vadd.f32 %v1085, %v1090
        %v1092 = vadd.f32 %v1086, %v1090
        %v1093 = vadd.f32 %v1091, 3.0
        %v1094 = vadd.f32 %v1092, 3.0
        %v1095 = vmax.f32 %v1093, 0.0
        %v1096 = vmax.f32 %v1094, 0.0
        %v1097 = vmin.f32 %v1095, 6.0
        %v1098 = vmin.f32 %v1096, 6.0
        %v1099 = vmul.f32 %v1091, %v1097
        %v1100 = vmul.f32 %v1092, %v1098
        %v1101 = vmul.f32 %v1099, 0.16666667
        %v1102 = vmul.f32 %v1100, 0.16666667
        %v1103 = vpack.c.bf16 %v1102, %v1101
        %v1104 = vld [vmem:[#allocation10] sm:$0xf]
        %v1105 = vld [vmem:[#allocation10 + $0x4] sm:$0xf]
        %v1106 = vld [vmem:[#allocation10 + $0x8] sm:$0xf]
        %v1107 = vld [vmem:[#allocation10 + $0xc] sm:$0xf]
        %v1108 = vld [vmem:[#allocation10 + $0x10] sm:$0xf]
        %v1109 = vld [vmem:[#allocation10 + $0x14] sm:$0xf]
        %v1110 = vld [vmem:[#allocation10 + $0x18] sm:$0xf]
        %v1111 = vld [vmem:[#allocation10 + $0x1c] sm:$0xf]
        %v1112 = vld [vmem:[#allocation10 + $0x20] sm:$0xf]
        %v1113 = vld [vmem:[#allocation10 + $0x24] sm:$0xf]
        %v1114 = vld [vmem:[#allocation10 + $0x28] sm:$0xf]
        %v1115 = vld [vmem:[#allocation10 + $0x2c] sm:$0xf]
        %v1116 = vld [vmem:[#allocation10 + $0x30] sm:$0xf]
        %v1117 = vld [vmem:[#allocation10 + $0x34] sm:$0xf]
        %v1118 = vld [vmem:[#allocation10 + $0x38] sm:$0xf]
        %v1119 = vld [vmem:[#allocation10 + $0x3c] sm:$0xf]
        %v1120 = vlaneseq
        %v1121 = vshrl.u32 %v1120, 7
        %v1122 = vsub.s32 5, %v1121
        %v1123 = vrot.slane %v381, %v1122
        %v1140 = vunpack.c.l.b16 %v1104
        %v1141 = vunpack.c.l.b16 %v1105
        %v1142 = vunpack.c.l.b16 %v1106
        %v1143 = vunpack.c.l.b16 %v1107
        %v1144 = vunpack.c.l.b16 %v1108
        %v1145 = vunpack.c.l.b16 %v1109
        %v1146 = vunpack.c.l.b16 %v1110
        %v1147 = vunpack.c.l.b16 %v1111
        %v1148 = vunpack.c.l.b16 %v1112
        %v1149 = vunpack.c.l.b16 %v1113
        %v1150 = vunpack.c.l.b16 %v1114
        %v1151 = vunpack.c.l.b16 %v1115
        %v1152 = vunpack.c.l.b16 %v1116
        %v1153 = vunpack.c.l.b16 %v1117
        %v1154 = vunpack.c.l.b16 %v1118
        %v1155 = vunpack.c.l.b16 %v1119
        %v1156 = vpack.c.b16 %v1141, %v1140
        %v1157 = vpack.c.b16 %v1143, %v1142
        %v1158 = vpack.c.b16 %v1145, %v1144
        %v1159 = vpack.c.b16 %v1147, %v1146
        %v1160 = vpack.c.b16 %v1149, %v1148
        %v1161 = vpack.c.b16 %v1151, %v1150
        %v1162 = vpack.c.b16 %v1153, %v1152
        %v1163 = vpack.c.b16 %v1155, %v1154
        %1172 = vmatprep.subr.bf16.mxu0 0
        %1173 = vmatpush1.bf16.msra.mxu0 %v1163
        %1174 = vmatprep.subr.bf16.mxu0 0
        %1175 = vmatpush1.bf16.msra.mxu0 %v1162
        %1176 = vmatprep.subr.bf16.mxu0 0
        %1177 = vmatpush1.bf16.msra.mxu0 %v1161
        %1178 = vmatprep.subr.bf16.mxu0 0
        %1179 = vmatpush1.bf16.msra.mxu0 %v1160
        %1180 = vmatprep.subr.bf16.mxu0 0
        %1181 = vmatpush1.bf16.msra.mxu0 %v1159
        %1182 = vmatprep.subr.bf16.mxu0 0
        %1183 = vmatpush1.bf16.msra.mxu0 %v1158
        %1184 = vmatprep.subr.bf16.mxu0 0
        %1185 = vmatpush1.bf16.msra.mxu0 %v1157
        %1186 = vmatprep.subr.bf16.mxu0 0
        %1187 = vmatpush1.bf16.msra.mxu0 %v1156
        %1188 = vmatprep.subr.bf16.mxu0 0
        %1189 = vmatpush2.bf16.msra.mxu0 0
        %1190 = vmatprep.subr.bf16.mxu0 0
        %1191 = vmatpush2.bf16.msra.mxu0 0
        %1192 = vmatprep.subr.bf16.mxu0 0
        %1193 = vmatpush2.bf16.msra.mxu0 0
        %1194 = vmatprep.subr.bf16.mxu0 0
        %1195 = vmatpush2.bf16.msra.mxu0 0
        %1196 = vmatprep.subr.bf16.mxu0 0
        %1197 = vmatpush2.bf16.msra.mxu0 0
        %1198 = vmatprep.subr.bf16.mxu0 0
        %1199 = vmatpush2.bf16.msra.mxu0 0
        %1200 = vmatprep.subr.bf16.mxu0 0
        %1201 = vmatpush2.bf16.msra.mxu0 0
        %1202 = vmatprep.subr.bf16.mxu0 0
        %1203 = vmatpush2.bf16.msra.mxu0 0
        %1204 = vmatprep.mubr.bf16.mxu0 0
        %1205 = vmatmul.mubr.bf16.gmra.mxu0 %v1103
        %v1206 = vpop.f32.mrf.mxu0
        %v1207 = vadd.f32 %v1123, %v1206
        %v1208 = vpop.f32.mrf.mxu0
        %v1209 = vpop.f32.mrf.mxu0
        %v1210 = vadd.f32 %v1123, %v1209
        %v1211 = vpop.f32.mrf.mxu0
        %1212 = vdwg.mxu0
        %v1213 = vtanh.pop %v1207
        %v1214 = vtanh.pop %v1210
        %v1215 = vpack.c.bf16 %v1214, %v1213
        %v1217 = vunpack.c.l.b16 %v1215
        %v1218 = vunpack.c.h.b16 %v1215
        %v1219 = vpack.c.b16 %v1217, %v1217
        %v1220 = vpack.c.b16 %v1218, %v1218
        %1223 = vst [vmem:[%s372] sm:$0xf] %v1219
        %1224 = vst [vmem:[%s372 + $0x4] sm:$0xf] %v1220
        %s1225 = sand.u32 %s206, 1
        %s1226 = scalar_lea.sflag [#allocation4], %s1225
        %s1227 = sand.u32 %s206, 1
        %s1228 = smul.addr %s1227, 8
        %s1229 = scalar_lea.vmem [#allocation11], %s1228
        // Predicated region
        $region73: #{tpu_custom_call.1} parent=51 // pred_check
          %p1230 = pneg %p216
        $region74: #{tpu_custom_call.1} parent=51 // pred_check_branch
          %1232 = sbr.rel (%p1230) target = $region76
        $region75: #{tpu_custom_call.1} parent=51 // pred_region
          %s1233 = smul.u32 2, %s25
          %s1235 = ssub.s32 128, 128
          %1236 = vsyncadd %s1226, %s1235
          %s1237 = smul.addr %s1233, 64
          %s1238 = scalar_lea.hbm %s8, %s1237
          %s1239 = sshll.u32 %s1229, 4
          %s1240 = int_to_ptr.vmem [resolvable:$true] %s1239
          %1245 = dma.vmem_to_hbm [thread:$0]  %s1240, 128, %s1238, %s1226, 64, 64, 4
        $region76: #{tpu_custom_call.1} parent=51 // pred_fallthru
          _
      $region52: #{tpu_custom_call.1} parent=5 // pred_fallthru
        _
      %p1246 = scmp.le.s32.totalorder 2, %s20
      // Predicated region
      $region77: #{tpu_custom_call.1} parent=5 // pred_check
        %p1247 = pneg %p1246
      $region78: #{tpu_custom_call.1} parent=5 // pred_check_branch
        %1249 = sbr.rel (%p1247) target = $region80
      $region79: #{tpu_custom_call.1} parent=5 // pred_region
        %s1250 = ssub.s32 %s20, 2
        // Predicated region
        $region81: #{tpu_custom_call.1} parent=79 // pred_check
          %p1251 = pneg %p222
        $region82: #{tpu_custom_call.1} parent=79 // pred_check_branch
          %1253 = sbr.rel (%p1251) target = $region84
        $region83: #{tpu_custom_call.1} parent=79 // pred_region
          %s1254 = sand.u32 %s207, 1
          %s1255 = scalar_lea.sflag [#allocation4], %s1254
          %s1256 = sand.u32 %s207, 1
          %s1257 = smul.addr %s1256, 8
          %s1258 = scalar_lea.vmem [#allocation11], %s1257
          %1259 = dma.done %s1255, 128
        $region84: #{tpu_custom_call.1} parent=79 // pred_fallthru
          _
      $region80: #{tpu_custom_call.1} parent=5 // pred_fallthru
        _
    $region6: #{tpu_custom_call.1} parent=1 // loop_footer
      %s24 = sadd.s32 1, %s20
    $region7: #{tpu_custom_call.1} parent=1 // loop_footer_branch
      %19 = sbr.rel target = $region3
    $region8: #{tpu_custom_call.1} parent=1 // loop_exit
      _
    %1260 = vsyncpa [#allocation3], 1
    %s1261 = scalar_lea.sflag [#allocation3], 1
    %1262 = vsyncpa %s1261, 1
    %1263 = vsyncpa [#allocation6], 1
    %1264 = vsyncpa [#allocation9], 1
    %1265 = vsyncpa [#allocation4], 1
    %s1266 = scalar_lea.sflag [#allocation4], 1
    %1267 = vsyncpa %s1266, 1

</llo_original>
